<compile_context>
chip_gen: v6e
topology: v6e:2x2x1
jax: 0.10.0
libtpu: 0.0.40
codegen_flags: <defaults>
</compile_context>

<pallas_src>
import functools

import numpy as np
import jax
import jax.numpy as jnp
from jax.experimental import pallas as pl
from jax.experimental.pallas import tpu as pltpu


# ----------------------------------------------------------------------------
# Fused kernel factory: conv(3x3, pad=1, both branches) + bias + ReLU +
# global-avg-pool + packed branch heads + Linear(4,128) + ReLU +
# Dropout(eval) + Linear(128, out).  One batch tile per grid step.
# ----------------------------------------------------------------------------
def _make_kernel(bn, H, WC, hw_scale):
    """bn: images per grid step, H: rows, WC = W*Cin, hw_scale = 1/(H*W)."""

    def kernel(x_ref, a_ref, bc_ref, wh_ref, bh_ref, w2_ref, b2_ref,
               out_ref, xp_ref, col_ref):
        # x_ref  : (bn, H, WC)            input rows, lanes = W*Cin
        # a_ref  : (3*WC, W*Cout2)        block-banded conv-as-matmul weights
        # bc_ref : (1, W*Cout2)           conv bias tiled over w
        # wh_ref : (W*Cout2, Hid)         w-sum + branch heads + Linear(4,128)
        # bh_ref : (1, Hid)
        # w2_ref : (Hid, Out), b2_ref: (1, Out)
        # out_ref: (bn, Out)
        # xp_ref : (bn, H+2, WC)          VMEM scratch, row-padded input
        # col_ref: (bn*H, 3*WC)           VMEM scratch, row-im2col tile
        f32 = jnp.float32
        M = bn * H
        hid = wh_ref.shape[1]

        # 1) Row padding in VMEM: zero ONLY the two halo rows, write the
        #    interior exactly once (W padding is encoded inside a_ref).
        zrow = jnp.zeros((bn, 1, WC), f32)
        xp_ref[:, 0:1, :] = zrow
        xp_ref[:, H + 1:H + 2, :] = zrow
        xp_ref[:, 1:H + 1, :] = x_ref[...].astype(f32)

        # 2) Row-im2col: lanes [kh*WC:(kh+1)*WC] hold padded rows kh..kh+H-1
        #    (sublane-offset slices only; no Cin-on-lanes relayouts).
        for kh in range(3):
            col_ref[:, kh * WC:(kh + 1) * WC] = (
                xp_ref[:, kh:kh + H, :].reshape(M, WC))

        # 3) Conv for BOTH branches: one MXU matmul (M,192)@(192,256),
        #    then bias + ReLU.
        conv = jnp.dot(col_ref[...], a_ref[...], preferred_element_type=f32)
        conv = jnp.maximum(conv + bc_ref[...], 0.0)          # (M, W*Cout2)

        # 4) (sum over w) o branch Linear(8,2) heads o Linear(4,128), folded
        #    into one (256, Hid) matmul.
        hrows = jnp.dot(conv, wh_ref[...], preferred_element_type=f32)  # (M, Hid)

        # 5) Average pool over rows (tiny sublane reduce), head bias, ReLU.
        #    Dropout(0.5) is eval-mode identity.
        hsum = jnp.sum(hrows.reshape(bn, H, hid), axis=1)     # (bn, Hid)
        hidden = jnp.maximum(hsum * hw_scale + bh_ref[...], 0.0)

        # 6) Final Linear(128, out).
        out_ref[...] = (jnp.dot(hidden, w2_ref[...], preferred_element_type=f32)
                        + b2_ref[...]).astype(out_ref.dtype)

    return kernel


def _pick_block_n(n, h, wc, wcout, hid, budget_bytes=6 << 20):
    """Batch tile: largest divisor of n that (a) keeps the (bn, Out) output
    block sublane-legal (bn % 8 == 0 or bn == n), (b) fits a per-step VMEM
    budget, and (c) leaves grid >= 2 when possible (v7x has 2 TensorCores)."""
    lanes = lambda k: ((k + 127) // 128) * 128
    per_img = 4 * (2 * h * lanes(wc)          # input block (double-buffered)
                   + (h + 2) * lanes(wc)      # padded-row scratch
                   + h * lanes(3 * wc)        # im2col scratch
                   + h * lanes(wcout)         # conv-activation temporary
                   + h * lanes(hid))          # hidden-rows temporary
    cap = max(1, budget_bytes // per_img)
    cands = [d for d in range(1, n + 1)
             if n % d == 0 and (d == n or d % 8 == 0)]
    fit = [d for d in cands if d <= cap] or [min(cands)]
    multi = [d for d in fit if 2 * d <= n]
    return max(multi or fit)


def combine_cnn_forward(x_nchw, packed):
    """Forward pass. x_nchw: (N, Cin, H, W) like the PyTorch module."""
    a_stack, bc_row, w_head, b_head, w2, b2 = packed
    N, Cin, H, W = x_nchw.shape
    WC = W * Cin
    WCout = bc_row.shape[1]      # W * Cout2
    Hid = b_head.shape[1]
    Out = b2.shape[1]

    # Layout plumbing only: NCHW -> (N, H, W*Cin) so the minor axis is
    # W*Cin-dense (64 lanes here) instead of Cin=4.
    x = jnp.transpose(x_nchw, (0, 2, 3, 1)).reshape(N, H, WC)

    bn = _pick_block_n(N, H, WC, WCout, Hid)
    grid = (N // bn,)
    kernel = _make_kernel(bn, H, WC, 1.0 / (H * W))

    out = pl.pallas_call(
        kernel,
        out_shape=jax.ShapeDtypeStruct((N, Out), jnp.float32),
        grid=grid,
        in_specs=[
            pl.BlockSpec((bn, H, WC), lambda b: (b, 0, 0)),
            pl.BlockSpec((3 * WC, WCout), lambda b: (0, 0)),   # resident weights
            pl.BlockSpec((1, WCout), lambda b: (0, 0)),
            pl.BlockSpec((WCout, Hid), lambda b: (0, 0)),
            pl.BlockSpec((1, Hid), lambda b: (0, 0)),
            pl.BlockSpec((Hid, Out), lambda b: (0, 0)),
            pl.BlockSpec((1, Out), lambda b: (0, 0)),
        ],
        out_specs=pl.BlockSpec((bn, Out), lambda b: (b, 0)),
        scratch_shapes=[
            pltpu.VMEM((bn, H + 2, WC), jnp.float32),    # row-padded input
            pltpu.VMEM((bn * H, 3 * WC), jnp.float32),   # row-im2col tile
        ],
        compiler_params=pltpu.CompilerParams(
            dimension_semantics=("parallel",),           # batch tiles across TCs
            vmem_limit_bytes=32 * 1024 * 1024),
    )(x, a_stack, bc_row, w_head, b_head, w2, b2)
    return out


# ----------------------------------------------------------------------------
# Parameters in PyTorch layouts + one-time packing into kernel layouts.
# ----------------------------------------------------------------------------
def init_params(key, cin=4, cout=8, branch_feat=2, hidden=128, output=10):
    ks = jax.random.split(key, 12)
    s = 0.1

    def branch(k0, k1, k2, k3):
        return (
            s * jax.random.normal(k0, (cout, cin, 3, 3), jnp.float32),    # OIHW
            s * jax.random.normal(k1, (cout,), jnp.float32),
            s * jax.random.normal(k2, (branch_feat, cout), jnp.float32),  # (out, in)
            s * jax.random.normal(k3, (branch_feat,), jnp.float32),
        )

    return {
        "m1": branch(*ks[0:4]),
        "m2": branch(*ks[4:8]),
        "out": (
            s * jax.random.normal(ks[8], (hidden, 2 * branch_feat), jnp.float32),
            s * jax.random.normal(ks[9], (hidden,), jnp.float32),
            s * jax.random.normal(ks[10], (output, hidden), jnp.float32),
            s * jax.random.normal(ks[11], (output,), jnp.float32),
        ),
    }


def pack_params(params, H, W):
    """PyTorch-layout params -> matmul-friendly kernel operands (one-time).

    a_stack[kh*W*Cin + w'*Cin + c, w*Cout2 + co] = Wconv_merged[co, c, kh, w'-w+1]
    for w'-w in {-1,0,1}, else 0 (block-banded; encodes W-direction padding).
    w_head = P @ blockdiag(Wf1^T, Wf2^T) @ Wo1^T folds w-sum of the average
    pool, both branch heads (torch.cat order) and Linear(4,128).
    """
    wc1, bc1, wf1, bf1 = params["m1"]
    wc2, bc2, wf2, bf2 = params["m2"]
    wo1, bo1, wo2, bo2 = params["out"]
    cout, cin = wc1.shape[0], wc1.shape[1]
    cout2 = 2 * cout
    f = wf1.shape[0]
    WC = W * cin

    wm = np.asarray(jnp.concatenate([wc1, wc2], axis=0))     # (Cout2, Cin, 3, 3)
    a = np.zeros((3 * WC, W * cout2), np.float32)
    for kh in range(3):
        for kw in range(3):
            dw = kw - 1
            for w in range(W):
                wp = w + dw
                if 0 <= wp < W:
                    a[kh * WC + wp * cin: kh * WC + (wp + 1) * cin,
                      w * cout2: (w + 1) * cout2] = wm[:, :, kh, kw].T
    a_stack = jnp.asarray(a)                                  # (3*W*Cin, W*Cout2)

    bc_row = jnp.tile(jnp.concatenate([bc1, bc2]), (W,))[None, :]   # (1, W*Cout2)

    z = jnp.zeros((cout, f), wf1.dtype)
    wh = jnp.concatenate([jnp.concatenate([wf1.T, z], axis=1),
                          jnp.concatenate([z, wf2.T], axis=1)], axis=0)  # (Cout2, 4)
    p_sum = jnp.tile(jnp.eye(cout2, dtype=jnp.float32), (W, 1))          # (W*Cout2, Cout2)
    w_head = p_sum @ wh @ wo1.T                                          # (W*Cout2, Hid)
    b_head = jnp.concatenate([bf1, bf2])[None, :] @ wo1.T + bo1[None, :]  # (1, Hid)

    w2, b2 = wo2.T, bo2[None, :]                                         # (Hid, Out), (1, Out)
    return (a_stack, bc_row, w_head, b_head, w2, b2)


# ----------------------------------------------------------------------------
# Pure-JAX reference (independent path) for a correctness check.
# ----------------------------------------------------------------------------
def _reference_forward(x_nchw, params):
    def branch(x, wc, bc, wf, bf):
        y = jax.lax.conv_general_dilated(
            x, wc, window_strides=(1, 1), padding=((1, 1), (1, 1)),
            dimension_numbers=("NCHW", "OIHW", "NCHW"))
        y = jax.nn.relu(y + bc[None, :, None, None])
        pooled = jnp.mean(y, axis=(2, 3))
        return pooled @ wf.T + bf

    x1 = branch(x_nchw, *params["m1"])
    x2 = branch(x_nchw, *params["m2"])
    feat = jnp.concatenate([x1, x2], axis=1)
    wo1, bo1, wo2, bo2 = params["out"]
    h = jax.nn.relu(feat @ wo1.T + bo1)
    return h @ wo2.T + bo2                      # Dropout(0.5) identity in eval


if __name__ == "__main__":
    key = jax.random.PRNGKey(0)
    k_x, k_p = jax.random.split(key)

    # Small shapes: batch=2, channels=4, spatial=16x16, output classes=10.
    x = jax.random.normal(k_x, (2, 4, 16, 16), jnp.float32)   # NCHW like PyTorch
    params = init_params(k_p)
    packed = pack_params(params, H=16, W=16)

    fwd = jax.jit(functools.partial(combine_cnn_forward, packed=packed))
    y = fwd(x)
    jax.block_until_ready(y)

    assert y.shape == (2, 10), y.shape
    y_ref = _reference_forward(x, params)
    assert bool(jnp.all(jnp.isfinite(y)))
    assert bool(jnp.allclose(y, y_ref, rtol=1e-4, atol=1e-4)), (
        float(jnp.max(jnp.abs(y - y_ref))))
    print("KERNEL_OK")
</pallas_src>

<mosaic_0001>
module attributes {stable_mosaic.version = 11 : i64} {
  func.func @kernel(%arg0: i32, %arg1: memref<2x16x64xf32, #tpu.memory_space<vmem>>, %arg2: memref<192x256xf32, #tpu.memory_space<vmem>>, %arg3: memref<1x256xf32, #tpu.memory_space<vmem>>, %arg4: memref<256x128xf32, #tpu.memory_space<vmem>>, %arg5: memref<1x128xf32, #tpu.memory_space<vmem>>, %arg6: memref<128x10xf32, #tpu.memory_space<vmem>>, %arg7: memref<1x10xf32, #tpu.memory_space<vmem>>, %arg8: memref<2x10xf32, #tpu.memory_space<vmem>>, %arg9: memref<2x18x64xf32, #tpu.memory_space<vmem>>, %arg10: memref<32x192xf32, #tpu.memory_space<vmem>>) attributes {dimension_semantics = [#tpu.dimension_semantics<parallel>], iteration_bounds = array<i64: 1>, scalar_prefetch = 0 : i64, scratch_operands = 2 : i64, tpu.core_type = #tpu.core_type<tc>, window_params = [{transform_indices = @transform_0, window_bounds = array<i64: 2, 16, 64>}, {pipeline_mode = #tpu.pipeline_mode<synchronous>, transform_indices = @transform_1, window_bounds = array<i64: 192, 256>}, {pipeline_mode = #tpu.pipeline_mode<synchronous>, transform_indices = @transform_2, window_bounds = array<i64: 1, 256>}, {pipeline_mode = #tpu.pipeline_mode<synchronous>, transform_indices = @transform_3, window_bounds = array<i64: 256, 128>}, {pipeline_mode = #tpu.pipeline_mode<synchronous>, transform_indices = @transform_4, window_bounds = array<i64: 1, 128>}, {pipeline_mode = #tpu.pipeline_mode<synchronous>, transform_indices = @transform_5, window_bounds = array<i64: 128, 10>}, {pipeline_mode = #tpu.pipeline_mode<synchronous>, transform_indices = @transform_6, window_bounds = array<i64: 1, 10>}, {transform_indices = @transform_7, window_bounds = array<i64: 2, 10>}]} {
    %cst = arith.constant 0.000000e+00 : f32
    %0 = vector.broadcast %cst : f32 to vector<2x1x64xf32>
    %c0 = arith.constant 0 : index
    %c0_0 = arith.constant 0 : index
    %c0_1 = arith.constant 0 : index
    %1 = vector.load %arg9[%c0, %c0_0, %c0_1] : memref<2x18x64xf32, #tpu.memory_space<vmem>>, vector<2x1x64xf32>
    tpu.vector_store %arg9[%c0, %c0_0, %c0_1], %0 {strides = array<i32>} : memref<2x18x64xf32, #tpu.memory_space<vmem>>, vector<2x1x64xf32>,
    %c0_2 = arith.constant 0 : index
    %c17 = arith.constant 17 : index
    %c0_3 = arith.constant 0 : index
    %2 = vector.load %arg9[%c0_2, %c17, %c0_3] : memref<2x18x64xf32, #tpu.memory_space<vmem>>, vector<2x1x64xf32>
    tpu.vector_store %arg9[%c0_2, %c17, %c0_3], %0 {strides = array<i32>} : memref<2x18x64xf32, #tpu.memory_space<vmem>>, vector<2x1x64xf32>,
    %c0_4 = arith.constant 0 : index
    %c0_5 = arith.constant 0 : index
    %c0_6 = arith.constant 0 : index
    %3 = vector.load %arg1[%c0_4, %c0_5, %c0_6] : memref<2x16x64xf32, #tpu.memory_space<vmem>>, vector<2x16x64xf32>
    %c0_7 = arith.constant 0 : index
    %c1 = arith.constant 1 : index
    %c0_8 = arith.constant 0 : index
    %4 = vector.load %arg9[%c0_7, %c1, %c0_8] : memref<2x18x64xf32, #tpu.memory_space<vmem>>, vector<2x16x64xf32>
    tpu.vector_store %arg9[%c0_7, %c1, %c0_8], %3 {strides = array<i32>} : memref<2x18x64xf32, #tpu.memory_space<vmem>>, vector<2x16x64xf32>,
    %c0_9 = arith.constant 0 : index
    %c0_10 = arith.constant 0 : index
    %c0_11 = arith.constant 0 : index
    %5 = vector.load %arg9[%c0_9, %c0_10, %c0_11] : memref<2x18x64xf32, #tpu.memory_space<vmem>>, vector<2x16x64xf32>
    %6 = vector.shape_cast %5 : vector<2x16x64xf32> to vector<32x64xf32>
    %c0_12 = arith.constant 0 : index
    %c0_13 = arith.constant 0 : index
    %7 = vector.load %arg10[%c0_12, %c0_13] : memref<32x192xf32, #tpu.memory_space<vmem>>, vector<32x64xf32>
    tpu.vector_store %arg10[%c0_12, %c0_13], %6 {strides = array<i32>} : memref<32x192xf32, #tpu.memory_space<vmem>>, vector<32x64xf32>,
    %c0_14 = arith.constant 0 : index
    %c1_15 = arith.constant 1 : index
    %c0_16 = arith.constant 0 : index
    %8 = vector.load %arg9[%c0_14, %c1_15, %c0_16] : memref<2x18x64xf32, #tpu.memory_space<vmem>>, vector<2x16x64xf32>
    %9 = vector.shape_cast %8 : vector<2x16x64xf32> to vector<32x64xf32>
    %c0_17 = arith.constant 0 : index
    %c64 = arith.constant 64 : index
    %10 = vector.load %arg10[%c0_17, %c64] : memref<32x192xf32, #tpu.memory_space<vmem>>, vector<32x64xf32>
    tpu.vector_store %arg10[%c0_17, %c64], %9 {strides = array<i32>} : memref<32x192xf32, #tpu.memory_space<vmem>>, vector<32x64xf32>,
    %c0_18 = arith.constant 0 : index
    %c2 = arith.constant 2 : index
    %c0_19 = arith.constant 0 : index
    %11 = vector.load %arg9[%c0_18, %c2, %c0_19] : memref<2x18x64xf32, #tpu.memory_space<vmem>>, vector<2x16x64xf32>
    %12 = vector.shape_cast %11 : vector<2x16x64xf32> to vector<32x64xf32>
    %c0_20 = arith.constant 0 : index
    %c128 = arith.constant 128 : index
    %13 = vector.load %arg10[%c0_20, %c128] : memref<32x192xf32, #tpu.memory_space<vmem>>, vector<32x64xf32>
    tpu.vector_store %arg10[%c0_20, %c128], %12 {strides = array<i32>} : memref<32x192xf32, #tpu.memory_space<vmem>>, vector<32x64xf32>,
    %c0_21 = arith.constant 0 : index
    %c0_22 = arith.constant 0 : index
    %14 = vector.load %arg10[%c0_21, %c0_22] : memref<32x192xf32, #tpu.memory_space<vmem>>, vector<32x192xf32>
    %c0_23 = arith.constant 0 : index
    %c0_24 = arith.constant 0 : index
    %15 = vector.load %arg2[%c0_23, %c0_24] : memref<192x256xf32, #tpu.memory_space<vmem>>, vector<192x256xf32>
    %cst_25 = arith.constant dense<0.000000e+00> : vector<32x256xf32>
    %16 = tpu.matmul %14, %15, %cst_25 {dimension_numbers = #tpu.dot_dimension_numbers<[1], [0], [0], [1], [0, 0, 1, 1], [], []>} : vector<32x192xf32>, vector<192x256xf32>, vector<32x256xf32> -> vector<32x256xf32>
    %c0_26 = arith.constant 0 : index
    %c0_27 = arith.constant 0 : index
    %17 = vector.load %arg3[%c0_26, %c0_27] : memref<1x256xf32, #tpu.memory_space<vmem>>, vector<1x256xf32>
    %18 = vector.broadcast %17 : vector<1x256xf32> to vector<32x256xf32>
    %19 = arith.addf %16, %18 : vector<32x256xf32>
    %cst_28 = arith.constant 0.000000e+00 : f32
    %20 = vector.broadcast %cst_28 : f32 to vector<32x256xf32>
    %21 = arith.maximumf %19, %20 : vector<32x256xf32>
    %c0_29 = arith.constant 0 : index
    %c0_30 = arith.constant 0 : index
    %22 = vector.load %arg4[%c0_29, %c0_30] : memref<256x128xf32, #tpu.memory_space<vmem>>, vector<256x128xf32>
    %cst_31 = arith.constant dense<0.000000e+00> : vector<32x128xf32>
    %23 = tpu.matmul %21, %22, %cst_31 {dimension_numbers = #tpu.dot_dimension_numbers<[1], [0], [0], [1], [0, 0, 1, 1], [], []>} : vector<32x256xf32>, vector<256x128xf32>, vector<32x128xf32> -> vector<32x128xf32>
    %24 = vector.shape_cast %23 : vector<32x128xf32> to vector<2x16x128xf32>
    %cst_32 = arith.constant dense<0.000000e+00> : vector<2x128xf32>
    %25 = vector.multi_reduction <add>, %24, %cst_32 [1] : vector<2x16x128xf32> to vector<2x128xf32>
    %cst_33 = arith.constant 3.906250e-03 : f32
    %26 = vector.broadcast %cst_33 : f32 to vector<2x128xf32>
    %27 = arith.mulf %25, %26 : vector<2x128xf32>
    %c0_34 = arith.constant 0 : index
    %c0_35 = arith.constant 0 : index
    %28 = vector.load %arg5[%c0_34, %c0_35] : memref<1x128xf32, #tpu.memory_space<vmem>>, vector<1x128xf32>
    %29 = vector.broadcast %28 : vector<1x128xf32> to vector<2x128xf32>
    %30 = arith.addf %27, %29 : vector<2x128xf32>
    %cst_36 = arith.constant 0.000000e+00 : f32
    %31 = vector.broadcast %cst_36 : f32 to vector<2x128xf32>
    %32 = arith.maximumf %30, %31 : vector<2x128xf32>
    %c0_37 = arith.constant 0 : index
    %c0_38 = arith.constant 0 : index
    %33 = vector.load %arg6[%c0_37, %c0_38] : memref<128x10xf32, #tpu.memory_space<vmem>>, vector<128x10xf32>
    %cst_39 = arith.constant dense<0.000000e+00> : vector<2x10xf32>
    %34 = tpu.matmul %32, %33, %cst_39 {dimension_numbers = #tpu.dot_dimension_numbers<[1], [0], [0], [1], [0, 0, 1, 1], [], []>} : vector<2x128xf32>, vector<128x10xf32>, vector<2x10xf32> -> vector<2x10xf32>
    %c0_40 = arith.constant 0 : index
    %c0_41 = arith.constant 0 : index
    %35 = vector.load %arg7[%c0_40, %c0_41] : memref<1x10xf32, #tpu.memory_space<vmem>>, vector<1x10xf32>
    %36 = vector.broadcast %35 : vector<1x10xf32> to vector<2x10xf32>
    %37 = arith.addf %34, %36 : vector<2x10xf32>
    %c0_42 = arith.constant 0 : index
    %c0_43 = arith.constant 0 : index
    %38 = vector.load %arg8[%c0_42, %c0_43] : memref<2x10xf32, #tpu.memory_space<vmem>>, vector<2x10xf32>
    tpu.vector_store %arg8[%c0_42, %c0_43], %37 {strides = array<i32>} : memref<2x10xf32, #tpu.memory_space<vmem>>, vector<2x10xf32>,
    return
  }
  func.func @transform_0(%arg0: i32) -> (i32, i32, i32) {
    %c0_i32 = arith.constant 0 : i32
    %c0_i32_0 = arith.constant 0 : i32
    %c0_i32_1 = arith.constant 0 : i32
    return %arg0, %c0_i32, %c0_i32_0 : i32, i32, i32
  }
  func.func @transform_1(%arg0: i32) -> (i32, i32) {
    %c0_i32 = arith.constant 0 : i32
    %c0_i32_0 = arith.constant 0 : i32
    %c0_i32_1 = arith.constant 0 : i32
    return %c0_i32, %c0_i32_0 : i32, i32
  }
  func.func @transform_2(%arg0: i32) -> (i32, i32) {
    %c0_i32 = arith.constant 0 : i32
    %c0_i32_0 = arith.constant 0 : i32
    %c0_i32_1 = arith.constant 0 : i32
    return %c0_i32, %c0_i32_0 : i32, i32
  }
  func.func @transform_3(%arg0: i32) -> (i32, i32) {
    %c0_i32 = arith.constant 0 : i32
    %c0_i32_0 = arith.constant 0 : i32
    %c0_i32_1 = arith.constant 0 : i32
    return %c0_i32, %c0_i32_0 : i32, i32
  }
  func.func @transform_4(%arg0: i32) -> (i32, i32) {
    %c0_i32 = arith.constant 0 : i32
    %c0_i32_0 = arith.constant 0 : i32
    %c0_i32_1 = arith.constant 0 : i32
    return %c0_i32, %c0_i32_0 : i32, i32
  }
  func.func @transform_5(%arg0: i32) -> (i32, i32) {
    %c0_i32 = arith.constant 0 : i32
    %c0_i32_0 = arith.constant 0 : i32
    %c0_i32_1 = arith.constant 0 : i32
    return %c0_i32, %c0_i32_0 : i32, i32
  }
  func.func @transform_6(%arg0: i32) -> (i32, i32) {
    %c0_i32 = arith.constant 0 : i32
    %c0_i32_0 = arith.constant 0 : i32
    %c0_i32_1 = arith.constant 0 : i32
    return %c0_i32, %c0_i32_0 : i32, i32
  }
  func.func @transform_7(%arg0: i32) -> (i32, i32) {
    %c0_i32 = arith.constant 0 : i32
    %c0_i32_0 = arith.constant 0 : i32
    return %arg0, %c0_i32 : i32, i32
  }
}

</mosaic_0001>

<llo_original>
// kernel: combine_cnn_forward.1
$region0: #{combine_cnn_forward.1}
  #allocation0 [shape = 'u32[]', space=smem, size = 0x4, offset = 0x4, fixed_abs, tag = 'smem constant byte address 0x4 - core index']
  #allocation1 [shape = 'u32[144,128]{1,0:T(1,128)}', space=vmem, size = 0x12000, scoped, tag = 'internal scratch']
  #allocation2 [shape = 'f32[2,18,64]{2,1,0:T(8,128)}', space=vmem, size = 0x6000, scoped, tag = 'scratch operand']
  #allocation3 [shape = 'f32[32,192]{1,0:T(8,128)}', space=vmem, size = 0x8000, scoped, tag = 'scratch operand']
  %s0 = inlined_call_operand.vmem [shape: f32[2,16,64], index: 0, kind: input, shape index: {}]
  %s1 = inlined_call_operand.vmem [shape: f32[192,256], index: 1, kind: input, shape index: {}]
  %s2 = inlined_call_operand.vmem [shape: f32[1,256], index: 2, kind: input, shape index: {}]
  %s3 = inlined_call_operand.hbm [shape: f32[256,128], index: 3, kind: input, shape index: {}]
  %s4 = inlined_call_operand.vmem [shape: f32[1,128], index: 4, kind: input, shape index: {}]
  %s5 = inlined_call_operand.hbm [shape: f32[128,10], index: 5, kind: input, shape index: {}]
  %s6 = inlined_call_operand.vmem [shape: f32[1,10], index: 6, kind: input, shape index: {}]
  %s7 = inlined_call_operand.hbm [shape: f32[2,10], index: 7, kind: output, shape index: {}]
  %s8 = sld [smem:[#allocation0]]
  $region46: #{combine_cnn_forward.1} parent=0
    _
  %s10 = ssub.s32 1, %s8
  %s11 = scalar_select 0, %s10, %s8
  $region1: #{combine_cnn_forward.1} parent=0
    #allocation4 [shape = 'u8[131072]{0}', space=vmem, size = 0x20000, scoped, tag = 'input window, operand 3, single buffered']
    #allocation5 [shape = 's32[1]{0}', space=sflag, size = 0x4, scoped, tag = 'scoped memory for combine_cnn_forward.1']
    #allocation6 [shape = 's32[1]{0}', space=sflag, size = 0x4, scoped, tag = 'scoped memory for combine_cnn_forward.1']
    #allocation7 [shape = 'u8[65536]{0}', space=vmem, size = 0x10000, scoped, tag = 'input window, operand 5, single buffered']
    #allocation8 [shape = 's32[1]{0}', space=sflag, size = 0x4, scoped, tag = 'scoped memory for combine_cnn_forward.1']
    #allocation9 [shape = 'u8[1024]{0}', space=vmem, size = 0x400, scoped, tag = 'output window, operand 0, single buffered']
    %12 = vsyncpa [#allocation5], 0
    %13 = vsyncpa [#allocation8], 0
    %14 = vsyncpa [#allocation6], 0
    // Predicated region
    $region2: #{combine_cnn_forward.1} parent=1 // pred_check
      _
    $region3: #{combine_cnn_forward.1} parent=1 // pred_check_branch
      %16 = sbr.rel (0) target = $region5
    $region4: #{combine_cnn_forward.1} parent=1 // pred_region
      _
    $region5: #{combine_cnn_forward.1} parent=1 // pred_fallthru
      _
    // Predicated region
    $region6: #{combine_cnn_forward.1} parent=1 // pred_check
      _
    $region7: #{combine_cnn_forward.1} parent=1 // pred_check_branch
      %18 = sbr.rel (0) target = $region9
    $region8: #{combine_cnn_forward.1} parent=1 // pred_region
      _
    $region9: #{combine_cnn_forward.1} parent=1 // pred_fallthru
      _
    // Predicated region
    $region10: #{combine_cnn_forward.1} parent=1 // pred_check
      _
    $region11: #{combine_cnn_forward.1} parent=1 // pred_check_branch
      %20 = sbr.rel (0) target = $region13
    $region12: #{combine_cnn_forward.1} parent=1 // pred_region
      _
    $region13: #{combine_cnn_forward.1} parent=1 // pred_fallthru
      _
    // Predicated region
    $region14: #{combine_cnn_forward.1} parent=1 // pred_check
      _
    $region15: #{combine_cnn_forward.1} parent=1 // pred_check_branch
      %22 = sbr.rel (0) target = $region17
    $region16: #{combine_cnn_forward.1} parent=1 // pred_region
      %s24 = ssub.s32 4096, 4096
      %25 = vsyncadd [#allocation5], %s24
      %s26 = sshll.u32 [#allocation4], 4
      %s27 = int_to_ptr.vmem [resolvable:$true] %s26
      %32 = dma.hbm_to_vmem [thread:$0]  %s3, 4096, %s27, [#allocation5], 128, 128, 8
    $region17: #{combine_cnn_forward.1} parent=1 // pred_fallthru
      _
    // Predicated region
    $region18: #{combine_cnn_forward.1} parent=1 // pred_check
      _
    $region19: #{combine_cnn_forward.1} parent=1 // pred_check_branch
      %34 = sbr.rel (0) target = $region21
    $region20: #{combine_cnn_forward.1} parent=1 // pred_region
      _
    $region21: #{combine_cnn_forward.1} parent=1 // pred_fallthru
      _
    // Predicated region
    $region22: #{combine_cnn_forward.1} parent=1 // pred_check
      _
    $region23: #{combine_cnn_forward.1} parent=1 // pred_check_branch
      %36 = sbr.rel (0) target = $region25
    $region24: #{combine_cnn_forward.1} parent=1 // pred_region
      %s38 = ssub.s32 2048, 2048
      %39 = vsyncadd [#allocation8], %s38
      %s40 = sshll.u32 [#allocation7], 4
      %s41 = int_to_ptr.vmem [resolvable:$true] %s40
      %46 = dma.hbm_to_vmem [thread:$0]  %s5, 2048, %s41, [#allocation8], 128, 128, 8
    $region25: #{combine_cnn_forward.1} parent=1 // pred_fallthru
      _
    // Predicated region
    $region26: #{combine_cnn_forward.1} parent=1 // pred_check
      _
    $region27: #{combine_cnn_forward.1} parent=1 // pred_check_branch
      %48 = sbr.rel (0) target = $region29
    $region28: #{combine_cnn_forward.1} parent=1 // pred_region
      _
    $region29: #{combine_cnn_forward.1} parent=1 // pred_fallthru
      _
    // Predicated region
    $region30: #{combine_cnn_forward.1} parent=1 // pred_check
      _
    $region31: #{combine_cnn_forward.1} parent=1 // pred_check_branch
      %50 = sbr.rel (0) target = $region33
    $region32: #{combine_cnn_forward.1} parent=1 // pred_region
      %51 = dma.done [#allocation5], 4096
    $region33: #{combine_cnn_forward.1} parent=1 // pred_fallthru
      _
    // Predicated region
    $region34: #{combine_cnn_forward.1} parent=1 // pred_check
      _
    $region35: #{combine_cnn_forward.1} parent=1 // pred_check_branch
      %53 = sbr.rel (0) target = $region37
    $region36: #{combine_cnn_forward.1} parent=1 // pred_region
      %54 = dma.done [#allocation8], 2048
    $region37: #{combine_cnn_forward.1} parent=1 // pred_fallthru
      _
    %vm55 = vcmask 516096
    %56 = vst.msk [vmem:[#allocation2] sm:$0x1] %vm55, 0.0
    %57 = vst.msk [vmem:[#allocation2 + $0x18] sm:$0x1] %vm55, 0.0
    %58 = vst.msk [vmem:[#allocation2 + $0x11] sm:$0x1] %vm55, 0.0
    %59 = vst.msk [vmem:[#allocation2 + $0x29] sm:$0x1] %vm55, 0.0
    %v60 = vld [vmem:[%s0] sm:$0xff]
    %v61 = vld [vmem:[%s0 + $0x8] sm:$0xff]
    %v62 = vld [vmem:[%s0 + $0x10] sm:$0xff]
    %v63 = vld [vmem:[%s0 + $0x18] sm:$0xff]
    %vm64 = vcmask 523264
    %65 = vst.msk [vmem:[#allocation2 + $0x1] sm:$0xff] %vm64, %v60
    %66 = vst.msk [vmem:[#allocation2 + $0x9] sm:$0xff] %vm64, %v61
    %67 = vst.msk [vmem:[#allocation2 + $0x19] sm:$0xff] %vm64, %v62
    %68 = vst.msk [vmem:[#allocation2 + $0x21] sm:$0xff] %vm64, %v63
    %v69 = vld [vmem:[#allocation2] sm:$0xff]
    %v70 = vld [vmem:[#allocation2 + $0x8] sm:$0xff]
    %v71 = vld [vmem:[#allocation2 + $0x18] sm:$0xff]
    %v72 = vld [vmem:[#allocation2 + $0x20] sm:$0xff]
    %73 = vst.msk [vmem:[#allocation3] sm:$0xff] %vm64, %v69
    %74 = vst.msk [vmem:[#allocation3 + $0x10] sm:$0xff] %vm64, %v70
    %75 = vst.msk [vmem:[#allocation3 + $0x20] sm:$0xff] %vm64, %v71
    %76 = vst.msk [vmem:[#allocation3 + $0x30] sm:$0xff] %vm64, %v72
    %v77 = vld [vmem:[#allocation2 + $0x1] sm:$0xff]
    %v78 = vld [vmem:[#allocation2 + $0x9] sm:$0xff]
    %v79 = vld [vmem:[#allocation2 + $0x19] sm:$0xff]
    %v80 = vld [vmem:[#allocation2 + $0x21] sm:$0xff]
    %85 = vrot.lane.b32.xlu0 %v77, 64
    %v86 = vpop.permute.xlu0 %85
    %87 = vrot.lane.b32.xlu0 %v78, 64
    %v88 = vpop.permute.xlu0 %87
    %89 = vrot.lane.b32.xlu0 %v79, 64
    %v90 = vpop.permute.xlu0 %89
    %91 = vrot.lane.b32.xlu0 %v80, 64
    %v92 = vpop.permute.xlu0 %91
    %vm97 = vcmask 1048064
    %98 = vst.msk [vmem:[#allocation3] sm:$0xff] %vm97, %v86
    %99 = vst.msk [vmem:[#allocation3 + $0x10] sm:$0xff] %vm97, %v88
    %100 = vst.msk [vmem:[#allocation3 + $0x20] sm:$0xff] %vm97, %v90
    %101 = vst.msk [vmem:[#allocation3 + $0x30] sm:$0xff] %vm97, %v92
    %v102 = vld [vmem:[#allocation2 + $0x2] sm:$0xff]
    %v103 = vld [vmem:[#allocation2 + $0xa] sm:$0xff]
    %v104 = vld [vmem:[#allocation2 + $0x1a] sm:$0xff]
    %v105 = vld [vmem:[#allocation2 + $0x22] sm:$0xff]
    %106 = vst.msk [vmem:[#allocation3 + $0x8] sm:$0xff] %vm64, %v102
    %107 = vst.msk [vmem:[#allocation3 + $0x18] sm:$0xff] %vm64, %v103
    %108 = vst.msk [vmem:[#allocation3 + $0x28] sm:$0xff] %vm64, %v104
    %109 = vst.msk [vmem:[#allocation3 + $0x38] sm:$0xff] %vm64, %v105
    %v110 = vld [vmem:[#allocation3] sm:$0xff]
    %v111 = vld [vmem:[#allocation3 + $0x8] sm:$0xff]
    %v112 = vld [vmem:[#allocation3 + $0x10] sm:$0xff]
    %v113 = vld [vmem:[#allocation3 + $0x18] sm:$0xff]
    %v114 = vld [vmem:[#allocation3 + $0x20] sm:$0xff]
    %v115 = vld [vmem:[#allocation3 + $0x28] sm:$0xff]
    %v116 = vld [vmem:[#allocation3 + $0x30] sm:$0xff]
    %v117 = vld [vmem:[#allocation3 + $0x38] sm:$0xff]
    %v118 = vld [vmem:[%s1] sm:$0xff]
    %v119 = vld [vmem:[%s1 + $0x8] sm:$0xff]
    %v120 = vld [vmem:[%s1 + $0x10] sm:$0xff]
    %v121 = vld [vmem:[%s1 + $0x18] sm:$0xff]
    %v122 = vld [vmem:[%s1 + $0x20] sm:$0xff]
    %v123 = vld [vmem:[%s1 + $0x28] sm:$0xff]
    %v124 = vld [vmem:[%s1 + $0x30] sm:$0xff]
    %v125 = vld [vmem:[%s1 + $0x38] sm:$0xff]
    %v126 = vld [vmem:[%s1 + $0x40] sm:$0xff]
    %v127 = vld [vmem:[%s1 + $0x48] sm:$0xff]
    %v128 = vld [vmem:[%s1 + $0x50] sm:$0xff]
    %v129 = vld [vmem:[%s1 + $0x58] sm:$0xff]
    %v130 = vld [vmem:[%s1 + $0x60] sm:$0xff]
    %v131 = vld [vmem:[%s1 + $0x68] sm:$0xff]
    %v132 = vld [vmem:[%s1 + $0x70] sm:$0xff]
    %v133 = vld [vmem:[%s1 + $0x78] sm:$0xff]
    %v134 = vld [vmem:[%s1 + $0x80] sm:$0xff]
    %v135 = vld [vmem:[%s1 + $0x88] sm:$0xff]
    %v136 = vld [vmem:[%s1 + $0x90] sm:$0xff]
    %v137 = vld [vmem:[%s1 + $0x98] sm:$0xff]
    %v138 = vld [vmem:[%s1 + $0xa0] sm:$0xff]
    %v139 = vld [vmem:[%s1 + $0xa8] sm:$0xff]
    %v140 = vld [vmem:[%s1 + $0xb0] sm:$0xff]
    %v141 = vld [vmem:[%s1 + $0xb8] sm:$0xff]
    %v142 = vld [vmem:[%s1 + $0xc0] sm:$0xff]
    %v143 = vld [vmem:[%s1 + $0xc8] sm:$0xff]
    %v144 = vld [vmem:[%s1 + $0xd0] sm:$0xff]
    %v145 = vld [vmem:[%s1 + $0xd8] sm:$0xff]
    %v146 = vld [vmem:[%s1 + $0xe0] sm:$0xff]
    %v147 = vld [vmem:[%s1 + $0xe8] sm:$0xff]
    %v148 = vld [vmem:[%s1 + $0xf0] sm:$0xff]
    %v149 = vld [vmem:[%s1 + $0xf8] sm:$0xff]
    %v150 = vld [vmem:[%s1 + $0x100] sm:$0xff]
    %v151 = vld [vmem:[%s1 + $0x108] sm:$0xff]
    %v152 = vld [vmem:[%s1 + $0x110] sm:$0xff]
    %v153 = vld [vmem:[%s1 + $0x118] sm:$0xff]
    %v154 = vld [vmem:[%s1 + $0x120] sm:$0xff]
    %v155 = vld [vmem:[%s1 + $0x128] sm:$0xff]
    %v156 = vld [vmem:[%s1 + $0x130] sm:$0xff]
    %v157 = vld [vmem:[%s1 + $0x138] sm:$0xff]
    %v158 = vld [vmem:[%s1 + $0x140] sm:$0xff]
    %v159 = vld [vmem:[%s1 + $0x148] sm:$0xff]
    %v160 = vld [vmem:[%s1 + $0x150] sm:$0xff]
    %v161 = vld [vmem:[%s1 + $0x158] sm:$0xff]
    %v162 = vld [vmem:[%s1 + $0x160] sm:$0xff]
    %v163 = vld [vmem:[%s1 + $0x168] sm:$0xff]
    %v164 = vld [vmem:[%s1 + $0x170] sm:$0xff]
    %v165 = vld [vmem:[%s1 + $0x178] sm:$0xff]
    %v166 = vld [vmem:[%s2] sm:$0x3]
    %v168 = vlaneseq
    %v169 = vshrl.u32 %v168, 7
    %v170 = vsub.s32 0, %v169
    %v171 = vrot.slane %v166, %v170
    %v172 = vlaneseq
    %v173 = vshrl.u32 %v172, 7
    %v174 = vsub.s32 1, %v173
    %v175 = vrot.slane %v166, %v174
    %v179 = vsel %vm64, %v111, 0
    %v182 = vsel %vm64, %v113, 0
    %v185 = vsel %vm64, %v115, 0
    %v188 = vsel %vm64, %v117, 0
    %190 = vmatprep.subr.mxu0 %v149
    %191 = vmatpush1.msra.mxu0 %v148
    %192 = vmatprep.subr.mxu0 %v147
    %193 = vmatpush1.msra.mxu0 %v146
    %194 = vmatprep.subr.mxu0 %v145
    %195 = vmatpush1.msra.mxu0 %v144
    %196 = vmatprep.subr.mxu0 %v143
    %197 = vmatpush1.msra.mxu0 %v142
    %198 = vmatprep.subr.mxu0 %v141
    %199 = vmatpush1.msra.mxu0 %v140
    %200 = vmatprep.subr.mxu0 %v139
    %201 = vmatpush1.msra.mxu0 %v138
    %202 = vmatprep.subr.mxu0 %v137
    %203 = vmatpush1.msra.mxu0 %v136
    %204 = vmatprep.subr.mxu0 %v135
    %205 = vmatpush1.msra.mxu0 %v134
    %206 = vmatprep.subr.mxu0 %v133
    %207 = vmatpush1.msra.mxu0 %v132
    %208 = vmatprep.subr.mxu0 %v131
    %209 = vmatpush1.msra.mxu0 %v130
    %210 = vmatprep.subr.mxu0 %v129
    %211 = vmatpush1.msra.mxu0 %v128
    %212 = vmatprep.subr.mxu0 %v127
    %213 = vmatpush1.msra.mxu0 %v126
    %214 = vmatprep.subr.mxu0 %v125
    %215 = vmatpush1.msra.mxu0 %v124
    %216 = vmatprep.subr.mxu0 %v123
    %217 = vmatpush1.msra.mxu0 %v122
    %218 = vmatprep.subr.mxu0 %v121
    %219 = vmatpush1.msra.mxu0 %v120
    %220 = vmatprep.subr.mxu0 %v119
    %221 = vmatpush1.msra.mxu0 %v118
    %222 = vmatprep.subr.mxu0 0.0
    %223 = vmatpush2.msra.mxu0 0.0
    %224 = vmatprep.subr.mxu0 0.0
    %225 = vmatpush2.msra.mxu0 0.0
    %226 = vmatprep.subr.mxu0 0.0
    %227 = vmatpush2.msra.mxu0 0.0
    %228 = vmatprep.subr.mxu0 0.0
    %229 = vmatpush2.msra.mxu0 0.0
    %230 = vmatprep.subr.mxu0 0.0
    %231 = vmatpush2.msra.mxu0 0.0
    %232 = vmatprep.subr.mxu0 0.0
    %233 = vmatpush2.msra.mxu0 0.0
    %234 = vmatprep.subr.mxu0 0.0
    %235 = vmatpush2.msra.mxu0 0.0
    %236 = vmatprep.subr.mxu0 0.0
    %237 = vmatpush2.msra.mxu0 0.0
    %238 = vmatprep.subr.mxu0 %v165
    %239 = vmatpush2.msra.mxu0 %v164
    %240 = vmatprep.subr.mxu0 %v163
    %241 = vmatpush2.msra.mxu0 %v162
    %242 = vmatprep.subr.mxu0 %v161
    %243 = vmatpush2.msra.mxu0 %v160
    %244 = vmatprep.subr.mxu0 %v159
    %245 = vmatpush2.msra.mxu0 %v158
    %246 = vmatprep.subr.mxu0 %v157
    %247 = vmatpush2.msra.mxu0 %v156
    %248 = vmatprep.subr.mxu0 %v155
    %249 = vmatpush2.msra.mxu0 %v154
    %250 = vmatprep.subr.mxu0 %v153
    %251 = vmatpush2.msra.mxu0 %v152
    %252 = vmatprep.subr.mxu0 %v151
    %253 = vmatpush2.msra.mxu0 %v150
    %254 = vmatprep.mubr.f32.mxu0 %v179
    %255 = vmatmul.mubr.f32.gmra.mxu0 %v110
    %v256 = vpop.f32.mrf.mxu0
    %v257 = vadd.f32 %v171, %v256
    %v258 = vpop.f32.mrf.mxu0
    %v259 = vadd.f32 %v175, %v258
    %260 = vmatprep.mubr.f32.mxu0 %v182
    %261 = vmatmul.mubr.f32.gmra.mxu0 %v112
    %v262 = vpop.f32.mrf.mxu0
    %v263 = vadd.f32 %v171, %v262
    %v264 = vpop.f32.mrf.mxu0
    %v265 = vadd.f32 %v175, %v264
    %266 = vmatprep.mubr.f32.mxu0 %v185
    %267 = vmatmul.mubr.f32.gmra.mxu0 %v114
    %v268 = vpop.f32.mrf.mxu0
    %v269 = vadd.f32 %v171, %v268
    %v270 = vpop.f32.mrf.mxu0
    %v271 = vadd.f32 %v175, %v270
    %272 = vmatprep.mubr.f32.mxu0 %v188
    %273 = vmatmul.mubr.f32.gmra.mxu0 %v116
    %v274 = vpop.f32.mrf.mxu0
    %v275 = vadd.f32 %v171, %v274
    %v276 = vpop.f32.mrf.mxu0
    %v277 = vadd.f32 %v175, %v276
    %278 = vdwg.mxu0
    %v279 = vmax.f32 %v257, 0.0
    %v280 = vmax.f32 %v259, 0.0
    %v281 = vmax.f32 %v263, 0.0
    %v282 = vmax.f32 %v265, 0.0
    %v283 = vmax.f32 %v269, 0.0
    %v284 = vmax.f32 %v271, 0.0
    %v285 = vmax.f32 %v275, 0.0
    %v286 = vmax.f32 %v277, 0.0
    %v287 = vld [vmem:[#allocation4] sm:$0xff]
    %v288 = vld [vmem:[#allocation4 + $0x8] sm:$0xff]
    %v289 = vld [vmem:[#allocation4 + $0x10] sm:$0xff]
    %v290 = vld [vmem:[#allocation4 + $0x18] sm:$0xff]
    %v291 = vld [vmem:[#allocation4 + $0x20] sm:$0xff]
    %v292 = vld [vmem:[#allocation4 + $0x28] sm:$0xff]
    %v293 = vld [vmem:[#allocation4 + $0x30] sm:$0xff]
    %v294 = vld [vmem:[#allocation4 + $0x38] sm:$0xff]
    %v295 = vld [vmem:[#allocation4 + $0x40] sm:$0xff]
    %v296 = vld [vmem:[#allocation4 + $0x48] sm:$0xff]
    %v297 = vld [vmem:[#allocation4 + $0x50] sm:$0xff]
    %v298 = vld [vmem:[#allocation4 + $0x58] sm:$0xff]
    %v299 = vld [vmem:[#allocation4 + $0x60] sm:$0xff]
    %v300 = vld [vmem:[#allocation4 + $0x68] sm:$0xff]
    %v301 = vld [vmem:[#allocation4 + $0x70] sm:$0xff]
    %v302 = vld [vmem:[#allocation4 + $0x78] sm:$0xff]
    %v303 = vld [vmem:[#allocation4 + $0x80] sm:$0xff]
    %v304 = vld [vmem:[#allocation4 + $0x88] sm:$0xff]
    %v305 = vld [vmem:[#allocation4 + $0x90] sm:$0xff]
    %v306 = vld [vmem:[#allocation4 + $0x98] sm:$0xff]
    %v307 = vld [vmem:[#allocation4 + $0xa0] sm:$0xff]
    %v308 = vld [vmem:[#allocation4 + $0xa8] sm:$0xff]
    %v309 = vld [vmem:[#allocation4 + $0xb0] sm:$0xff]
    %v310 = vld [vmem:[#allocation4 + $0xb8] sm:$0xff]
    %v311 = vld [vmem:[#allocation4 + $0xc0] sm:$0xff]
    %v312 = vld [vmem:[#allocation4 + $0xc8] sm:$0xff]
    %v313 = vld [vmem:[#allocation4 + $0xd0] sm:$0xff]
    %v314 = vld [vmem:[#allocation4 + $0xd8] sm:$0xff]
    %v315 = vld [vmem:[#allocation4 + $0xe0] sm:$0xff]
    %v316 = vld [vmem:[#allocation4 + $0xe8] sm:$0xff]
    %v317 = vld [vmem:[#allocation4 + $0xf0] sm:$0xff]
    %v318 = vld [vmem:[#allocation4 + $0xf8] sm:$0xff]
    %319 = vmatprep.subr.mxu0 0.0
    %320 = vmatpush1.msra.mxu0 %v302
    %321 = vmatprep.subr.mxu0 0.0
    %322 = vmatpush1.msra.mxu0 %v301
    %323 = vmatprep.subr.mxu0 0.0
    %324 = vmatpush1.msra.mxu0 %v300
    %325 = vmatprep.subr.mxu0 0.0
    %326 = vmatpush1.msra.mxu0 %v299
    %327 = vmatprep.subr.mxu0 0.0
    %328 = vmatpush1.msra.mxu0 %v298
    %329 = vmatprep.subr.mxu0 0.0
    %330 = vmatpush1.msra.mxu0 %v297
    %331 = vmatprep.subr.mxu0 0.0
    %332 = vmatpush1.msra.mxu0 %v296
    %333 = vmatprep.subr.mxu0 0.0
    %334 = vmatpush1.msra.mxu0 %v295
    %335 = vmatprep.subr.mxu0 0.0
    %336 = vmatpush1.msra.mxu0 %v294
    %337 = vmatprep.subr.mxu0 0.0
    %338 = vmatpush1.msra.mxu0 %v293
    %339 = vmatprep.subr.mxu0 0.0
    %340 = vmatpush1.msra.mxu0 %v292
    %341 = vmatprep.subr.mxu0 0.0
    %342 = vmatpush1.msra.mxu0 %v291
    %343 = vmatprep.subr.mxu0 0.0
    %344 = vmatpush1.msra.mxu0 %v290
    %345 = vmatprep.subr.mxu0 0.0
    %346 = vmatpush1.msra.mxu0 %v289
    %347 = vmatprep.subr.mxu0 0.0
    %348 = vmatpush1.msra.mxu0 %v288
    %349 = vmatprep.subr.mxu0 0.0
    %350 = vmatpush1.msra.mxu0 %v287
    %351 = vmatprep.subr.mxu0 0.0
    %352 = vmatpush2.msra.mxu0 %v318
    %353 = vmatprep.subr.mxu0 0.0
    %354 = vmatpush2.msra.mxu0 %v317
    %355 = vmatprep.subr.mxu0 0.0
    %356 = vmatpush2.msra.mxu0 %v316
    %357 = vmatprep.subr.mxu0 0.0
    %358 = vmatpush2.msra.mxu0 %v315
    %359 = vmatprep.subr.mxu0 0.0
    %360 = vmatpush2.msra.mxu0 %v314
    %361 = vmatprep.subr.mxu0 0.0
    %362 = vmatpush2.msra.mxu0 %v313
    %363 = vmatprep.subr.mxu0 0.0
    %364 = vmatpush2.msra.mxu0 %v312
    %365 = vmatprep.subr.mxu0 0.0
    %366 = vmatpush2.msra.mxu0 %v311
    %367 = vmatprep.subr.mxu0 0.0
    %368 = vmatpush2.msra.mxu0 %v310
    %369 = vmatprep.subr.mxu0 0.0
    %370 = vmatpush2.msra.mxu0 %v309
    %371 = vmatprep.subr.mxu0 0.0
    %372 = vmatpush2.msra.mxu0 %v308
    %373 = vmatprep.subr.mxu0 0.0
    %374 = vmatpush2.msra.mxu0 %v307
    %375 = vmatprep.subr.mxu0 0.0
    %376 = vmatpush2.msra.mxu0 %v306
    %377 = vmatprep.subr.mxu0 0.0
    %378 = vmatpush2.msra.mxu0 %v305
    %379 = vmatprep.subr.mxu0 0.0
    %380 = vmatpush2.msra.mxu0 %v304
    %381 = vmatprep.subr.mxu0 0.0
    %382 = vmatpush2.msra.mxu0 %v303
    %383 = vmatprep.mubr.f32.mxu0 %v280
    %384 = vmatmul.mubr.f32.gmra.mxu0 %v279
    %v385 = vpop.f32.mrf.mxu0
    %v386 = vadd.f32 0.0, %v385
    %v387 = vpop.f32.mrf.mxu0
    %388 = vmatprep.mubr.f32.mxu0 %v282
    %389 = vmatmul.mubr.f32.gmra.mxu0 %v281
    %v390 = vpop.f32.mrf.mxu0
    %v391 = vadd.f32 0.0, %v390
    %v392 = vpop.f32.mrf.mxu0
    %393 = vmatprep.mubr.f32.mxu0 %v284
    %394 = vmatmul.mubr.f32.gmra.mxu0 %v283
    %v395 = vpop.f32.mrf.mxu0
    %v396 = vadd.f32 0.0, %v395
    %v397 = vpop.f32.mrf.mxu0
    %398 = vmatprep.mubr.f32.mxu0 %v286
    %399 = vmatmul.mubr.f32.gmra.mxu0 %v285
    %v400 = vpop.f32.mrf.mxu0
    %v401 = vadd.f32 0.0, %v400
    %v402 = vpop.f32.mrf.mxu0
    %403 = vdwg.mxu0
    %v404 = vadd.f32 %v386, %v391
    %v405 = vrot.slane %v404, 4
    %v406 = vadd.f32 %v404, %v405
    %v407 = vrot.slane %v406, 2
    %v408 = vadd.f32 %v406, %v407
    %v409 = vrot.slane %v408, 1
    %v410 = vadd.f32 %v408, %v409
    %v411 = vadd.f32 %v396, %v401
    %v412 = vrot.slane %v411, 4
    %v413 = vadd.f32 %v411, %v412
    %v414 = vrot.slane %v413, 2
    %v415 = vadd.f32 %v413, %v414
    %v416 = vrot.slane %v415, 1
    %v417 = vadd.f32 %v415, %v416
    %v418 = vmul.f32 %v410, 0.00390625
    %v419 = vmul.f32 %v417, 0.00390625
    %v420 = vld [vmem:[%s4] sm:$0x1]
    %v422 = vlaneseq
    %v423 = vshrl.u32 %v422, 7
    %v424 = vsub.s32 0, %v423
    %v425 = vrot.slane %v420, %v424
    %v427 = vadd.f32 %v418, %v425
    %v428 = vadd.f32 %v419, %v425
    %v429 = vmax.f32 %v427, 0.0
    %v430 = vmax.f32 %v428, 0.0
    %v431 = vld [vmem:[#allocation7] sm:$0xff]
    %v432 = vld [vmem:[#allocation7 + $0x8] sm:$0xff]
    %v433 = vld [vmem:[#allocation7 + $0x10] sm:$0xff]
    %v434 = vld [vmem:[#allocation7 + $0x18] sm:$0xff]
    %v435 = vld [vmem:[#allocation7 + $0x20] sm:$0xff]
    %v436 = vld [vmem:[#allocation7 + $0x28] sm:$0xff]
    %v437 = vld [vmem:[#allocation7 + $0x30] sm:$0xff]
    %v438 = vld [vmem:[#allocation7 + $0x38] sm:$0xff]
    %v439 = vld [vmem:[#allocation7 + $0x40] sm:$0xff]
    %v440 = vld [vmem:[#allocation7 + $0x48] sm:$0xff]
    %v441 = vld [vmem:[#allocation7 + $0x50] sm:$0xff]
    %v442 = vld [vmem:[#allocation7 + $0x58] sm:$0xff]
    %v443 = vld [vmem:[#allocation7 + $0x60] sm:$0xff]
    %v444 = vld [vmem:[#allocation7 + $0x68] sm:$0xff]
    %v445 = vld [vmem:[#allocation7 + $0x70] sm:$0xff]
    %v446 = vld [vmem:[#allocation7 + $0x78] sm:$0xff]
    %v447 = vld [vmem:[%s6] sm:$0x1]
    %v449 = vlaneseq
    %v450 = vshrl.u32 %v449, 7
    %v451 = vsub.s32 0, %v450
    %v452 = vrot.slane %v447, %v451
    %v456 = vrot.slane %v430, 7
    %vm457 = vcmask 1041409
    %v458 = vsel %vm457, %v456, %v429
    %460 = vmatprep.subr.mxu0 0.0
    %461 = vmatpush1.msra.mxu0 %v446
    %462 = vmatprep.subr.mxu0 0.0
    %463 = vmatpush1.msra.mxu0 %v445
    %464 = vmatprep.subr.mxu0 0.0
    %465 = vmatpush1.msra.mxu0 %v444
    %466 = vmatprep.subr.mxu0 0.0
    %467 = vmatpush1.msra.mxu0 %v443
    %468 = vmatprep.subr.mxu0 0.0
    %469 = vmatpush1.msra.mxu0 %v442
    %470 = vmatprep.subr.mxu0 0.0
    %471 = vmatpush1.msra.mxu0 %v441
    %472 = vmatprep.subr.mxu0 0.0
    %473 = vmatpush1.msra.mxu0 %v440
    %474 = vmatprep.subr.mxu0 0.0
    %475 = vmatpush1.msra.mxu0 %v439
    %476 = vmatprep.subr.mxu0 0.0
    %477 = vmatpush1.msra.mxu0 %v438
    %478 = vmatprep.subr.mxu0 0.0
    %479 = vmatpush1.msra.mxu0 %v437
    %480 = vmatprep.subr.mxu0 0.0
    %481 = vmatpush1.msra.mxu0 %v436
    %482 = vmatprep.subr.mxu0 0.0
    %483 = vmatpush1.msra.mxu0 %v435
    %484 = vmatprep.subr.mxu0 0.0
    %485 = vmatpush1.msra.mxu0 %v434
    %486 = vmatprep.subr.mxu0 0.0
    %487 = vmatpush1.msra.mxu0 %v433
    %488 = vmatprep.subr.mxu0 0.0
    %489 = vmatpush1.msra.mxu0 %v432
    %490 = vmatprep.subr.mxu0 0.0
    %491 = vmatpush1.msra.mxu0 %v431
    %492 = vmatprep.subr.mxu0 0.0
    %493 = vmatpush2.msra.mxu0 0.0
    %494 = vmatprep.subr.mxu0 0.0
    %495 = vmatpush2.msra.mxu0 0.0
    %496 = vmatprep.subr.mxu0 0.0
    %497 = vmatpush2.msra.mxu0 0.0
    %498 = vmatprep.subr.mxu0 0.0
    %499 = vmatpush2.msra.mxu0 0.0
    %500 = vmatprep.subr.mxu0 0.0
    %501 = vmatpush2.msra.mxu0 0.0
    %502 = vmatprep.subr.mxu0 0.0
    %503 = vmatpush2.msra.mxu0 0.0
    %504 = vmatprep.subr.mxu0 0.0
    %505 = vmatpush2.msra.mxu0 0.0
    %506 = vmatprep.subr.mxu0 0.0
    %507 = vmatpush2.msra.mxu0 0.0
    %508 = vmatprep.subr.mxu0 0.0
    %509 = vmatpush2.msra.mxu0 0.0
    %510 = vmatprep.subr.mxu0 0.0
    %511 = vmatpush2.msra.mxu0 0.0
    %512 = vmatprep.subr.mxu0 0.0
    %513 = vmatpush2.msra.mxu0 0.0
    %514 = vmatprep.subr.mxu0 0.0
    %515 = vmatpush2.msra.mxu0 0.0
    %516 = vmatprep.subr.mxu0 0.0
    %517 = vmatpush2.msra.mxu0 0.0
    %518 = vmatprep.subr.mxu0 0.0
    %519 = vmatpush2.msra.mxu0 0.0
    %520 = vmatprep.subr.mxu0 0.0
    %521 = vmatpush2.msra.mxu0 0.0
    %522 = vmatprep.subr.mxu0 0.0
    %523 = vmatpush2.msra.mxu0 0.0
    %524 = vmatprep.mubr.f32.mxu0 0.0
    %525 = vmatmul.mubr.f32.gmra.mxu0 %v458
    %v526 = vpop.f32.mrf.mxu0
    %v527 = vadd.f32 %v452, %v526
    %v528 = vpop.f32.mrf.mxu0
    %529 = vdwg.mxu0
    %vm530 = vcmask 74752
    %531 = vst.msk [vmem:[#allocation9] sm:$0x3] %vm530, %v527
    // Predicated region
    $region38: #{combine_cnn_forward.1} parent=1 // pred_check
      _
    $region39: #{combine_cnn_forward.1} parent=1 // pred_check_branch
      %533 = sbr.rel (0) target = $region41
    $region40: #{combine_cnn_forward.1} parent=1 // pred_region
      %s535 = ssub.s32 32, 32
      %536 = vsyncadd [#allocation6], %s535
      %s538 = sshll.u32 [#allocation9], 4
      %s539 = int_to_ptr.vmem [resolvable:$true] %s538
      %541 = dma.vmem_to_hbm [thread:$0]  %s539, 32, %s7, [#allocation6]
    $region41: #{combine_cnn_forward.1} parent=1 // pred_fallthru
      _
    // Predicated region
    $region42: #{combine_cnn_forward.1} parent=1 // pred_check
      _
    $region43: #{combine_cnn_forward.1} parent=1 // pred_check_branch
      %543 = sbr.rel (0) target = $region45
    $region44: #{combine_cnn_forward.1} parent=1 // pred_region
      %544 = dma.done [#allocation6], 32
    $region45: #{combine_cnn_forward.1} parent=1 // pred_fallthru
      _
    %545 = vsyncpa [#allocation5], 1
    %546 = vsyncpa [#allocation8], 1
    %547 = vsyncpa [#allocation6], 1

</llo_original>
